<compile_context>
chip_gen: v6e
topology: v6e:2x2x1
jax: 0.10.0
libtpu: 0.0.40
codegen_flags: <defaults>
</compile_context>

<pallas_src>
import jax
import jax.numpy as jnp
from jax.experimental import pallas as pl
from jax.experimental.pallas import tpu as pltpu


def _round_up(x, m):
    return ((x + m - 1) // m) * m


# ----------------------------- kernels -------------------------------------


def _ffn_kernel_out_acc(x_ref, w1_ref, w2_ref, o_ref):
    """f32-output path: accumulate directly into the resident output block."""
    k = pl.program_id(1)

    @pl.when(k == 0)
    def _init():
        o_ref[...] = jnp.zeros_like(o_ref)

    h = jnp.dot(x_ref[...], w1_ref[...], preferred_element_type=jnp.float32)
    h = h * jax.nn.sigmoid(h)  # SiLU (sigmoid -> EUP, mul -> VPU)
    # TODO(synk): dropout is identity in eval mode; training-mode dropout would
    # mask `h` here using pltpu.prng_seed + pltpu.prng_random_bits.
    o_ref[...] += jnp.dot(
        h.astype(w2_ref.dtype), w2_ref[...], preferred_element_type=jnp.float32
    )


def _ffn_kernel_scratch_acc(x_ref, w1_ref, w2_ref, o_ref, acc_ref):
    """Low-precision output path: f32 VMEM accumulator, cast at the last k-step."""
    k = pl.program_id(1)

    @pl.when(k == 0)
    def _init():
        acc_ref[...] = jnp.zeros_like(acc_ref)

    h = jnp.dot(x_ref[...], w1_ref[...], preferred_element_type=jnp.float32)
    h = h * jax.nn.sigmoid(h)  # SiLU
    acc_ref[...] += jnp.dot(
        h.astype(w2_ref.dtype), w2_ref[...], preferred_element_type=jnp.float32
    )

    @pl.when(k == pl.num_programs(1) - 1)
    def _finalize():
        o_ref[...] = acc_ref[...].astype(o_ref.dtype)


# ----------------------------- wrapper --------------------------------------


def _hw_defaults():
    """Generation-aware tile targets and VMEM-limit cap."""
    vmem_cap = 128 * 1024 * 1024
    kind = ""
    try:
        vmem_cap = int(pltpu.get_tpu_info().vmem_capacity_bytes)
    except Exception:
        pass
    try:
        kind = jax.devices()[0].device_kind.lower()
    except Exception:
        pass

    if vmem_cap <= 64 * 1024 * 1024 or "7" in kind:
        # v7x-class: 64 MiB VMEM, ~3.2 TB/s HBM -> break-even ~310 flops/byte.
        tm_t, tk_t = 512, 512
    elif "v5" in kind:
        # v5e: 128 MiB VMEM, break-even ~240 -> spend VMEM on tk (fewer k-steps,
        # half the f32 accumulator read-modify-write traffic).
        tm_t, tk_t = 512, 1024
    else:
        # v6e-class: break-even ~650-720 flops/byte -> big token tiles.
        tm_t, tk_t = 1024, 1024

    cap = max(32 * 1024 * 1024, int(vmem_cap * 0.85))
    return tm_t, tk_t, cap


def feed_forward(x, w1_t, w2_t, *, tm=None, tk=None, interpret=False):
    """x: [B, S, d_model]; w1_t: [d_model, d_ff]; w2_t: [d_ff, d_model]."""
    B, S, d_model = x.shape
    d_ff = w1_t.shape[1]
    assert w1_t.shape == (d_model, d_ff)
    assert w2_t.shape == (d_ff, d_model)

    tm_default, tk_default, vmem_cap = _hw_defaults()
    if tm is None:
        tm = tm_default
    if tk is None:
        tk = tk_default

    in_dtype = jnp.dtype(x.dtype)
    out_dtype = in_dtype
    itemsize = in_dtype.itemsize
    out_itemsize = jnp.dtype(out_dtype).itemsize
    sub = 16 if itemsize == 2 else 8  # bf16 needs (16,128) sublane packing

    M = B * S
    x2d = x.reshape(M, d_model)

    # ---- token tile tm: MXU-aligned; pad M rather than one full-extent block.
    if M >= 2 * tm:
        for align in (256, 128, sub):
            if tm >= align:
                tm = (tm // align) * align
                break
    elif M >= 512:
        # Keep >= 2 (balanced) token tiles so the "parallel" axis can be
        # sharded across v7x's two TensorCores (harmless on 1-TC chips).
        tm = _round_up(-(-M // 2), sub)
    else:
        tm = _round_up(M, sub)
    m_pad = _round_up(M, tm)

    # ---- d_ff chunk tk: lane-aligned (multiple of 128); pad d_ff if needed.
    tk = min(tk, _round_up(d_ff, 128))
    tk = max(128, (tk // 128) * 128)
    dff_pad = _round_up(d_ff, tk)

    if m_pad != M:
        x2d = jnp.pad(x2d, ((0, m_pad - M), (0, 0)))
    if dff_pad != d_ff:
        w1_t = jnp.pad(w1_t, ((0, 0), (0, dff_pad - d_ff)))
        w2_t = jnp.pad(w2_t, ((0, dff_pad - d_ff), (0, 0)))

    grid = (m_pad // tm, dff_pad // tk)

    # f32 output: accumulate straight into the resident output block (saves the
    # tm*d_model*4 B scratch + a full-tile copy). bf16 output keeps f32 scratch.
    use_out_acc = out_dtype == jnp.float32
    kernel = _ffn_kernel_out_acc if use_out_acc else _ffn_kernel_scratch_acc
    scratch_shapes = [] if use_out_acc else [pltpu.VMEM((tm, d_model), jnp.float32)]

    # Approximate double-buffered VMEM footprint.
    need = (
        2 * tm * d_model * itemsize      # x
        + 2 * d_model * tk * itemsize    # w1 chunk
        + 2 * tk * d_model * itemsize    # w2 chunk
        + 2 * tm * d_model * out_itemsize  # out
    )
    if not use_out_acc:
        need += tm * d_model * 4
    vmem_limit = int(min(max(need * 5 // 4, 32 * 1024 * 1024), vmem_cap))

    cost = pl.CostEstimate(
        flops=4 * m_pad * d_model * dff_pad,      # two matmuls
        transcendentals=m_pad * dff_pad,          # sigmoid
        bytes_accessed=int(
            m_pad * d_model * (itemsize + out_itemsize)
            + 2 * d_model * dff_pad * itemsize * grid[0]
        ),
    )

    out2d = pl.pallas_call(
        kernel,
        out_shape=jax.ShapeDtypeStruct((m_pad, d_model), out_dtype),
        grid_spec=pltpu.PrefetchScalarGridSpec(
            num_scalar_prefetch=0,
            grid=grid,
            in_specs=[
                pl.BlockSpec((tm, d_model), lambda i, k: (i, 0)),
                pl.BlockSpec((d_model, tk), lambda i, k: (0, k)),
                pl.BlockSpec((tk, d_model), lambda i, k: (k, 0)),
            ],
            out_specs=pl.BlockSpec((tm, d_model), lambda i, k: (i, 0)),
            scratch_shapes=scratch_shapes,
        ),
        compiler_params=pltpu.CompilerParams(
            dimension_semantics=("parallel", "arbitrary"),
            vmem_limit_bytes=vmem_limit,
        ),
        cost_estimate=cost,
        interpret=interpret,
    )(x2d, w1_t, w2_t)

    return out2d[:M].reshape(B, S, d_model)


def feed_forward_ref(x, w1_t, w2_t):
    h = jnp.dot(x.astype(jnp.float32), w1_t.astype(jnp.float32))
    h = h * jax.nn.sigmoid(h)
    return jnp.dot(h, w2_t.astype(jnp.float32))


if __name__ == "__main__":
    key = jax.random.PRNGKey(0)
    kx, k1, k2 = jax.random.split(key, 3)

    # --- case 1: small, nicely divisible shapes -----------------------------
    B, S, d_model, d_ff = 2, 8, 32, 128
    x = jax.random.normal(kx, (B, S, d_model), dtype=jnp.float32)
    # nn.Linear(d_model, d_ff) weight is [d_ff, d_model]; kernel takes transposes.
    w1_t = jax.random.normal(k1, (d_model, d_ff), dtype=jnp.float32) * (1.0 / d_model ** 0.5)
    w2_t = jax.random.normal(k2, (d_ff, d_model), dtype=jnp.float32) * (1.0 / d_ff ** 0.5)

    out = jax.block_until_ready(feed_forward(x, w1_t, w2_t))
    ref = feed_forward_ref(x, w1_t, w2_t)
    assert out.shape == (B, S, d_model)
    assert jnp.allclose(out, ref, atol=1e-4, rtol=1e-4)

    # bf16 fast path (bf16 operands, f32 MXU accumulation): loose check.
    out_bf16 = jax.block_until_ready(
        feed_forward(
            x.astype(jnp.bfloat16),
            w1_t.astype(jnp.bfloat16),
            w2_t.astype(jnp.bfloat16),
        )
    )
    assert out_bf16.shape == (B, S, d_model)
    assert jnp.allclose(out_bf16.astype(jnp.float32), ref, atol=1e-1, rtol=1e-1)

    # --- case 2: awkward shapes to exercise the M / d_ff padding path -------
    B2, S2, dm2, dff2 = 2, 7, 32, 96
    x2 = jax.random.normal(kx, (B2, S2, dm2), dtype=jnp.float32)
    w1b = jax.random.normal(k1, (dm2, dff2), dtype=jnp.float32) * (1.0 / dm2 ** 0.5)
    w2b = jax.random.normal(k2, (dff2, dm2), dtype=jnp.float32) * (1.0 / dff2 ** 0.5)
    out2 = jax.block_until_ready(feed_forward(x2, w1b, w2b))
    ref2 = feed_forward_ref(x2, w1b, w2b)
    assert out2.shape == (B2, S2, dm2)
    assert jnp.allclose(out2, ref2, atol=1e-4, rtol=1e-4)

    print("KERNEL_OK")
</pallas_src>

<mosaic_0001>
module attributes {stable_mosaic.version = 11 : i64} {
  func.func @_ffn_kernel_out_acc(%arg0: i32, %arg1: i32, %arg2: memref<16x32xf32, #tpu.memory_space<vmem>>, %arg3: memref<32x128xf32, #tpu.memory_space<vmem>>, %arg4: memref<128x32xf32, #tpu.memory_space<vmem>>, %arg5: memref<16x32xf32, #tpu.memory_space<vmem>>) attributes {dimension_semantics = [#tpu.dimension_semantics<parallel>, #tpu.dimension_semantics<arbitrary>], iteration_bounds = array<i64: 1, 1>, scalar_prefetch = 0 : i64, scratch_operands = 0 : i64, tpu.core_type = #tpu.core_type<tc>, window_params = [{transform_indices = @transform_0, window_bounds = array<i64: 16, 32>}, {transform_indices = @transform_1, window_bounds = array<i64: 32, 128>}, {transform_indices = @transform_2, window_bounds = array<i64: 128, 32>}, {transform_indices = @transform_3, window_bounds = array<i64: 16, 32>}]} {
    %c0_i32 = arith.constant 0 : i32
    %0 = arith.cmpi eq, %arg1, %c0_i32 : i32
    %1 = arith.extui %0 : i1 to i32
    %c0_i32_0 = arith.constant 0 : i32
    %2 = arith.cmpi ne, %1, %c0_i32_0 : i32
    scf.if %2 {
      %cst_12 = arith.constant 0.000000e+00 : f32
      %17 = vector.broadcast %cst_12 : f32 to vector<16x32xf32>
      %c0_13 = arith.constant 0 : index
      %c0_14 = arith.constant 0 : index
      %18 = vector.load %arg5[%c0_13, %c0_14] : memref<16x32xf32, #tpu.memory_space<vmem>>, vector<16x32xf32>
      tpu.vector_store %arg5[%c0_13, %c0_14], %17 {strides = array<i32>} : memref<16x32xf32, #tpu.memory_space<vmem>>, vector<16x32xf32>,
    } else {
    }
    %c0 = arith.constant 0 : index
    %c0_1 = arith.constant 0 : index
    %3 = vector.load %arg2[%c0, %c0_1] : memref<16x32xf32, #tpu.memory_space<vmem>>, vector<16x32xf32>
    %c0_2 = arith.constant 0 : index
    %c0_3 = arith.constant 0 : index
    %4 = vector.load %arg3[%c0_2, %c0_3] : memref<32x128xf32, #tpu.memory_space<vmem>>, vector<32x128xf32>
    %cst = arith.constant dense<0.000000e+00> : vector<16x128xf32>
    %5 = tpu.matmul %3, %4, %cst {dimension_numbers = #tpu.dot_dimension_numbers<[1], [0], [0], [1], [0, 0, 1, 1], [], []>} : vector<16x32xf32>, vector<32x128xf32>, vector<16x128xf32> -> vector<16x128xf32>
    %6 = arith.negf %5 : vector<16x128xf32>
    %7 = math.exp %6 : vector<16x128xf32>
    %cst_4 = arith.constant 1.000000e+00 : f32
    %8 = vector.broadcast %cst_4 : f32 to vector<16x128xf32>
    %9 = arith.addf %8, %7 : vector<16x128xf32>
    %10 = arith.divf %8, %9 : vector<16x128xf32>
    %11 = arith.mulf %5, %10 : vector<16x128xf32>
    %c0_5 = arith.constant 0 : index
    %c0_6 = arith.constant 0 : index
    %12 = vector.load %arg5[%c0_5, %c0_6] : memref<16x32xf32, #tpu.memory_space<vmem>>, vector<16x32xf32>
    %c0_7 = arith.constant 0 : index
    %c0_8 = arith.constant 0 : index
    %13 = vector.load %arg4[%c0_7, %c0_8] : memref<128x32xf32, #tpu.memory_space<vmem>>, vector<128x32xf32>
    %cst_9 = arith.constant dense<0.000000e+00> : vector<16x32xf32>
    %14 = tpu.matmul %11, %13, %cst_9 {dimension_numbers = #tpu.dot_dimension_numbers<[1], [0], [0], [1], [0, 0, 1, 1], [], []>} : vector<16x128xf32>, vector<128x32xf32>, vector<16x32xf32> -> vector<16x32xf32>
    %15 = arith.addf %12, %14 : vector<16x32xf32>
    %c0_10 = arith.constant 0 : index
    %c0_11 = arith.constant 0 : index
    %16 = vector.load %arg5[%c0_10, %c0_11] : memref<16x32xf32, #tpu.memory_space<vmem>>, vector<16x32xf32>
    tpu.vector_store %arg5[%c0_10, %c0_11], %15 {strides = array<i32>} : memref<16x32xf32, #tpu.memory_space<vmem>>, vector<16x32xf32>,
    return
  }
  func.func @transform_0(%arg0: i32, %arg1: i32) -> (i32, i32) {
    %c0_i32 = arith.constant 0 : i32
    %c0_i32_0 = arith.constant 0 : i32
    return %arg0, %c0_i32 : i32, i32
  }
  func.func @transform_1(%arg0: i32, %arg1: i32) -> (i32, i32) {
    %c0_i32 = arith.constant 0 : i32
    %c0_i32_0 = arith.constant 0 : i32
    return %c0_i32, %arg1 : i32, i32
  }
  func.func @transform_2(%arg0: i32, %arg1: i32) -> (i32, i32) {
    %c0_i32 = arith.constant 0 : i32
    %c0_i32_0 = arith.constant 0 : i32
    return %arg1, %c0_i32 : i32, i32
  }
  func.func @transform_3(%arg0: i32, %arg1: i32) -> (i32, i32) {
    %c0_i32 = arith.constant 0 : i32
    %c0_i32_0 = arith.constant 0 : i32
    return %arg0, %c0_i32 : i32, i32
  }
}

</mosaic_0001>

<llo_original>
// kernel: tpu_custom_call.1
$region0: #{tpu_custom_call.1}
  #allocation0 [shape = 'u32[]', space=smem, size = 0x4, offset = 0x4, fixed_abs, tag = 'smem constant byte address 0x4 - core index']
  #allocation1 [shape = 'u32[144,128]{1,0:T(1,128)}', space=vmem, size = 0x12000, scoped, tag = 'internal scratch']
  %s0 = inlined_call_operand.vmem [shape: f32[16,32], index: 0, kind: input, shape index: {}]
  %s1 = inlined_call_operand.vmem [shape: f32[32,128], index: 1, kind: input, shape index: {}]
  %s2 = inlined_call_operand.vmem [shape: f32[128,32], index: 2, kind: input, shape index: {}]
  %s3 = inlined_call_operand.hbm [shape: f32[16,32], index: 3, kind: output, shape index: {}]
  %s4 = sld [smem:[#allocation0]]
  $region26: #{tpu_custom_call.1} parent=0
    _
  %s6 = ssub.s32 1, %s4
  %s7 = scalar_select 0, %s6, %s4
  $region1: #{tpu_custom_call.1} parent=0
    #allocation2 [shape = 'u8[8192]{0}', space=vmem, size = 0x2000, scoped, tag = 'output window, operand 0, single buffered']
    #allocation3 [shape = 's32[1]{0}', space=sflag, size = 0x4, scoped, tag = 'scoped memory for tpu_custom_call.1']
    %8 = vsyncpa [#allocation3], 0
    // Predicated region
    $region2: #{tpu_custom_call.1} parent=1 // pred_check
      _
    $region3: #{tpu_custom_call.1} parent=1 // pred_check_branch
      %10 = sbr.rel (0) target = $region5
    $region4: #{tpu_custom_call.1} parent=1 // pred_region
      _
    $region5: #{tpu_custom_call.1} parent=1 // pred_fallthru
      _
    // Predicated region
    $region6: #{tpu_custom_call.1} parent=1 // pred_check
      _
    $region7: #{tpu_custom_call.1} parent=1 // pred_check_branch
      %12 = sbr.rel (0) target = $region9
    $region8: #{tpu_custom_call.1} parent=1 // pred_region
      _
    $region9: #{tpu_custom_call.1} parent=1 // pred_fallthru
      _
    // Predicated region
    $region10: #{tpu_custom_call.1} parent=1 // pred_check
      _
    $region11: #{tpu_custom_call.1} parent=1 // pred_check_branch
      %14 = sbr.rel (0) target = $region13
    $region12: #{tpu_custom_call.1} parent=1 // pred_region
      _
    $region13: #{tpu_custom_call.1} parent=1 // pred_fallthru
      _
    %p15 = scmp.eq.s32.totalorder 0, 0
    // Predicated region
    $region14: #{tpu_custom_call.1} parent=1 // pred_check
      %p16 = pneg %p15
    $region15: #{tpu_custom_call.1} parent=1 // pred_check_branch
      %18 = sbr.rel (%p16) target = $region17
    $region16: #{tpu_custom_call.1} parent=1 // pred_region
      %vm19 = vcmask 261120
      %20 = vst.msk [vmem:[#allocation2] sm:$0xff] %vm19, 0.0
      %21 = vst.msk [vmem:[#allocation2 + $0x8] sm:$0xff] %vm19, 0.0
    $region17: #{tpu_custom_call.1} parent=1 // pred_fallthru
      _
    %v22 = vld [vmem:[%s0] sm:$0xff]
    %v23 = vld [vmem:[%s0 + $0x8] sm:$0xff]
    %v24 = vld [vmem:[%s1] sm:$0xff]
    %v25 = vld [vmem:[%s1 + $0x8] sm:$0xff]
    %v26 = vld [vmem:[%s1 + $0x10] sm:$0xff]
    %v27 = vld [vmem:[%s1 + $0x18] sm:$0xff]
    %vm28 = vcmask 261120
    %v30 = vsel %vm28, %v22, 0
    %v33 = vsel %vm28, %v23, 0
    %35 = vmatprep.subr.mxu0 0.0
    %36 = vmatpush1.msra.mxu0 0.0
    %37 = vmatprep.subr.mxu0 0.0
    %38 = vmatpush1.msra.mxu0 0.0
    %39 = vmatprep.subr.mxu0 0.0
    %40 = vmatpush1.msra.mxu0 0.0
    %41 = vmatprep.subr.mxu0 0.0
    %42 = vmatpush1.msra.mxu0 0.0
    %43 = vmatprep.subr.mxu0 0.0
    %44 = vmatpush1.msra.mxu0 0.0
    %45 = vmatprep.subr.mxu0 0.0
    %46 = vmatpush1.msra.mxu0 0.0
    %47 = vmatprep.subr.mxu0 0.0
    %48 = vmatpush1.msra.mxu0 0.0
    %49 = vmatprep.subr.mxu0 0.0
    %50 = vmatpush1.msra.mxu0 0.0
    %51 = vmatprep.subr.mxu0 0.0
    %52 = vmatpush1.msra.mxu0 0.0
    %53 = vmatprep.subr.mxu0 0.0
    %54 = vmatpush1.msra.mxu0 0.0
    %55 = vmatprep.subr.mxu0 0.0
    %56 = vmatpush1.msra.mxu0 0.0
    %57 = vmatprep.subr.mxu0 0.0
    %58 = vmatpush1.msra.mxu0 0.0
    %59 = vmatprep.subr.mxu0 0.0
    %60 = vmatpush1.msra.mxu0 %v27
    %61 = vmatprep.subr.mxu0 0.0
    %62 = vmatpush1.msra.mxu0 %v26
    %63 = vmatprep.subr.mxu0 0.0
    %64 = vmatpush1.msra.mxu0 %v25
    %65 = vmatprep.subr.mxu0 0.0
    %66 = vmatpush1.msra.mxu0 %v24
    %67 = vmatprep.subr.mxu0 0.0
    %68 = vmatpush2.msra.mxu0 0.0
    %69 = vmatprep.subr.mxu0 0.0
    %70 = vmatpush2.msra.mxu0 0.0
    %71 = vmatprep.subr.mxu0 0.0
    %72 = vmatpush2.msra.mxu0 0.0
    %73 = vmatprep.subr.mxu0 0.0
    %74 = vmatpush2.msra.mxu0 0.0
    %75 = vmatprep.subr.mxu0 0.0
    %76 = vmatpush2.msra.mxu0 0.0
    %77 = vmatprep.subr.mxu0 0.0
    %78 = vmatpush2.msra.mxu0 0.0
    %79 = vmatprep.subr.mxu0 0.0
    %80 = vmatpush2.msra.mxu0 0.0
    %81 = vmatprep.subr.mxu0 0.0
    %82 = vmatpush2.msra.mxu0 0.0
    %83 = vmatprep.subr.mxu0 0.0
    %84 = vmatpush2.msra.mxu0 0.0
    %85 = vmatprep.subr.mxu0 0.0
    %86 = vmatpush2.msra.mxu0 0.0
    %87 = vmatprep.subr.mxu0 0.0
    %88 = vmatpush2.msra.mxu0 0.0
    %89 = vmatprep.subr.mxu0 0.0
    %90 = vmatpush2.msra.mxu0 0.0
    %91 = vmatprep.subr.mxu0 0.0
    %92 = vmatpush2.msra.mxu0 0.0
    %93 = vmatprep.subr.mxu0 0.0
    %94 = vmatpush2.msra.mxu0 0.0
    %95 = vmatprep.subr.mxu0 0.0
    %96 = vmatpush2.msra.mxu0 0.0
    %97 = vmatprep.subr.mxu0 0.0
    %98 = vmatpush2.msra.mxu0 0.0
    %99 = vmatprep.mubr.f32.mxu0 0.0
    %100 = vmatmul.mubr.f32.gmra.mxu0 %v30
    %v101 = vpop.f32.mrf.mxu0
    %v102 = vadd.f32 0.0, %v101
    %v103 = vpop.f32.mrf.mxu0
    %104 = vmatprep.mubr.f32.mxu0 0.0
    %105 = vmatmul.mubr.f32.gmra.mxu0 %v33
    %v106 = vpop.f32.mrf.mxu0
    %v107 = vadd.f32 0.0, %v106
    %v108 = vpop.f32.mrf.mxu0
    %109 = vdwg.mxu0
    %v110 = vxor.u32 %v102, 2147483648
    %v111 = vxor.u32 %v107, 2147483648
    %v112 = vmul.f32 %v110, 1.442695
    %v113 = vpow.pop %v112
    %v114 = vmul.f32 %v111, 1.442695
    %v115 = vpow.pop %v114
    %v116 = vadd.f32 %v113, 1.0
    %v117 = vadd.f32 %v115, 1.0
    %v118 = vrcp.pop %v116
    %v119 = vmul.f32 1.0, %v118
    %v120 = vrcp.pop %v117
    %v121 = vmul.f32 1.0, %v120
    %v122 = vmul.f32 %v102, %v119
    %v123 = vmul.f32 %v107, %v121
    %v124 = vld [vmem:[#allocation2] sm:$0xff]
    %v125 = vld [vmem:[#allocation2 + $0x8] sm:$0xff]
    %v126 = vld [vmem:[%s2] sm:$0xff]
    %v127 = vld [vmem:[%s2 + $0x8] sm:$0xff]
    %v128 = vld [vmem:[%s2 + $0x10] sm:$0xff]
    %v129 = vld [vmem:[%s2 + $0x18] sm:$0xff]
    %v130 = vld [vmem:[%s2 + $0x20] sm:$0xff]
    %v131 = vld [vmem:[%s2 + $0x28] sm:$0xff]
    %v132 = vld [vmem:[%s2 + $0x30] sm:$0xff]
    %v133 = vld [vmem:[%s2 + $0x38] sm:$0xff]
    %v134 = vld [vmem:[%s2 + $0x40] sm:$0xff]
    %v135 = vld [vmem:[%s2 + $0x48] sm:$0xff]
    %v136 = vld [vmem:[%s2 + $0x50] sm:$0xff]
    %v137 = vld [vmem:[%s2 + $0x58] sm:$0xff]
    %v138 = vld [vmem:[%s2 + $0x60] sm:$0xff]
    %v139 = vld [vmem:[%s2 + $0x68] sm:$0xff]
    %v140 = vld [vmem:[%s2 + $0x70] sm:$0xff]
    %v141 = vld [vmem:[%s2 + $0x78] sm:$0xff]
    %142 = vmatprep.subr.mxu0 0.0
    %143 = vmatpush1.msra.mxu0 %v141
    %144 = vmatprep.subr.mxu0 0.0
    %145 = vmatpush1.msra.mxu0 %v140
    %146 = vmatprep.subr.mxu0 0.0
    %147 = vmatpush1.msra.mxu0 %v139
    %148 = vmatprep.subr.mxu0 0.0
    %149 = vmatpush1.msra.mxu0 %v138
    %150 = vmatprep.subr.mxu0 0.0
    %151 = vmatpush1.msra.mxu0 %v137
    %152 = vmatprep.subr.mxu0 0.0
    %153 = vmatpush1.msra.mxu0 %v136
    %154 = vmatprep.subr.mxu0 0.0
    %155 = vmatpush1.msra.mxu0 %v135
    %156 = vmatprep.subr.mxu0 0.0
    %157 = vmatpush1.msra.mxu0 %v134
    %158 = vmatprep.subr.mxu0 0.0
    %159 = vmatpush1.msra.mxu0 %v133
    %160 = vmatprep.subr.mxu0 0.0
    %161 = vmatpush1.msra.mxu0 %v132
    %162 = vmatprep.subr.mxu0 0.0
    %163 = vmatpush1.msra.mxu0 %v131
    %164 = vmatprep.subr.mxu0 0.0
    %165 = vmatpush1.msra.mxu0 %v130
    %166 = vmatprep.subr.mxu0 0.0
    %167 = vmatpush1.msra.mxu0 %v129
    %168 = vmatprep.subr.mxu0 0.0
    %169 = vmatpush1.msra.mxu0 %v128
    %170 = vmatprep.subr.mxu0 0.0
    %171 = vmatpush1.msra.mxu0 %v127
    %172 = vmatprep.subr.mxu0 0.0
    %173 = vmatpush1.msra.mxu0 %v126
    %174 = vmatprep.subr.mxu0 0.0
    %175 = vmatpush2.msra.mxu0 0.0
    %176 = vmatprep.subr.mxu0 0.0
    %177 = vmatpush2.msra.mxu0 0.0
    %178 = vmatprep.subr.mxu0 0.0
    %179 = vmatpush2.msra.mxu0 0.0
    %180 = vmatprep.subr.mxu0 0.0
    %181 = vmatpush2.msra.mxu0 0.0
    %182 = vmatprep.subr.mxu0 0.0
    %183 = vmatpush2.msra.mxu0 0.0
    %184 = vmatprep.subr.mxu0 0.0
    %185 = vmatpush2.msra.mxu0 0.0
    %186 = vmatprep.subr.mxu0 0.0
    %187 = vmatpush2.msra.mxu0 0.0
    %188 = vmatprep.subr.mxu0 0.0
    %189 = vmatpush2.msra.mxu0 0.0
    %190 = vmatprep.subr.mxu0 0.0
    %191 = vmatpush2.msra.mxu0 0.0
    %192 = vmatprep.subr.mxu0 0.0
    %193 = vmatpush2.msra.mxu0 0.0
    %194 = vmatprep.subr.mxu0 0.0
    %195 = vmatpush2.msra.mxu0 0.0
    %196 = vmatprep.subr.mxu0 0.0
    %197 = vmatpush2.msra.mxu0 0.0
    %198 = vmatprep.subr.mxu0 0.0
    %199 = vmatpush2.msra.mxu0 0.0
    %200 = vmatprep.subr.mxu0 0.0
    %201 = vmatpush2.msra.mxu0 0.0
    %202 = vmatprep.subr.mxu0 0.0
    %203 = vmatpush2.msra.mxu0 0.0
    %204 = vmatprep.subr.mxu0 0.0
    %205 = vmatpush2.msra.mxu0 0.0
    %206 = vmatprep.mubr.f32.mxu0 0.0
    %207 = vmatmul.mubr.f32.gmra.mxu0 %v122
    %v208 = vpop.f32.mrf.mxu0
    %v209 = vadd.f32 0.0, %v208
    %v210 = vpop.f32.mrf.mxu0
    %211 = vmatprep.mubr.f32.mxu0 0.0
    %212 = vmatmul.mubr.f32.gmra.mxu0 %v123
    %v213 = vpop.f32.mrf.mxu0
    %v214 = vadd.f32 0.0, %v213
    %v215 = vpop.f32.mrf.mxu0
    %216 = vdwg.mxu0
    %v217 = vadd.f32 %v124, %v209
    %v218 = vadd.f32 %v125, %v214
    %219 = vst.msk [vmem:[#allocation2] sm:$0xff] %vm28, %v217
    %220 = vst.msk [vmem:[#allocation2 + $0x8] sm:$0xff] %vm28, %v218
    // Predicated region
    $region18: #{tpu_custom_call.1} parent=1 // pred_check
      _
    $region19: #{tpu_custom_call.1} parent=1 // pred_check_branch
      %222 = sbr.rel (0) target = $region21
    $region20: #{tpu_custom_call.1} parent=1 // pred_region
      %s224 = ssub.s32 256, 256
      %225 = vsyncadd [#allocation3], %s224
      %s226 = sshll.u32 [#allocation2], 4
      %s227 = int_to_ptr.vmem [resolvable:$true] %s226
      %232 = dma.vmem_to_hbm [thread:$0]  %s227, 256, %s3, [#allocation3], 128, 128, 8
    $region21: #{tpu_custom_call.1} parent=1 // pred_fallthru
      _
    // Predicated region
    $region22: #{tpu_custom_call.1} parent=1 // pred_check
      _
    $region23: #{tpu_custom_call.1} parent=1 // pred_check_branch
      %234 = sbr.rel (0) target = $region25
    $region24: #{tpu_custom_call.1} parent=1 // pred_region
      %235 = dma.done [#allocation3], 256
    $region25: #{tpu_custom_call.1} parent=1 // pred_fallthru
      _
    %236 = vsyncpa [#allocation3], 1

</llo_original>
